<compile_context>
chip_gen: v6e
topology: v6e:2x2x1
jax: 0.10.0
libtpu: 0.0.40
codegen_flags: <defaults>
</compile_context>

<pallas_src>
import functools

import jax
import jax.numpy as jnp
from jax.experimental import pallas as pl
from jax.experimental.pallas import tpu as pltpu


def _contrastive_kernel(z1_ref, z2nt_ref, z2d_ref, out_ref, *, inv_temp, use_const_shift):
    # ---- normalize the z1 row tile once (f32); 1/temp is folded into the small LHS.
    z1 = z1_ref[...]                                            # (tq, D) f32
    inv_n1 = jax.lax.rsqrt(
        jnp.maximum(jnp.sum(z1 * z1, axis=-1, keepdims=True), 1e-16))
    z1n = z1 * inv_n1                                           # unit rows, f32

    # ---- pos = diag(cosine sim): row-wise dot with the aligned z2 rows, kept in f32.
    z2d = z2d_ref[...]                                          # (tq, D) f32
    inv_nd = jax.lax.rsqrt(
        jnp.maximum(jnp.sum(z2d * z2d, axis=-1, keepdims=True), 1e-16))
    pos = jnp.sum(z1n * (z2d * inv_nd), axis=-1, keepdims=True)  # (tq, 1) f32

    # ---- sim / temp for the whole row in one bf16 MXU matmul (f32 accumulation).
    lhs = (z1n * inv_temp).astype(jnp.bfloat16)                 # (tq, D) bf16
    s = jax.lax.dot_general(
        lhs, z2nt_ref[...],                                     # (D, N) bf16, resident
        (((1,), (0,)), ((), ())),
        preferred_element_type=jnp.float32)                     # (tq, N) = sim / temp

    # ---- logsumexp over the full row.
    if use_const_shift:
        # unit-norm rows => |s| <= inv_temp, so a constant shift is safe (no overflow),
        # and the cross-lane max reduce is eliminated.
        shift = jnp.float32(inv_temp)
        lse = shift + jnp.log(jnp.sum(jnp.exp(s - shift), axis=-1, keepdims=True))
    else:
        # fallback for pathologically small temperatures (temp < ~0.02)
        m = jnp.max(s, axis=-1, keepdims=True)
        lse = m + jnp.log(jnp.sum(jnp.exp(s - m), axis=-1, keepdims=True))

    out_ref[...] = pos - lse                                    # (tq, 1)


def _choose_row_tile(N):
    """Pick tq: multiple of 8 dividing N (or N itself), >=2 tiles when possible,
    sized so the (tq, N) f32 scores tile stays <= ~8 MiB."""
    if N % 8 != 0:
        return N                                  # single full block (full-dim exception)
    cap = (8 * 1024 * 1024) // (4 * N)            # keep (tq, N) f32 scores <= 8 MiB
    cap = max(8, min(512, cap))
    if N >= 16:
        cap = min(cap, N // 2)                    # >= 2 row tiles keeps both v7x TCs busy
    cap = max(8, (cap // 8) * 8)
    best = 8
    for d in range(8, cap + 1, 8):
        if N % d == 0:
            best = d
    return best


def contrastive_loss(z1, z2, temperature=0.1, *, tq=None):
    """z1, z2: [N, D] arrays. Returns scalar float32 loss."""
    assert z1.shape == z2.shape and z1.ndim == 2
    N, D = z1.shape
    z1 = z1.astype(jnp.float32)
    z2 = z2.astype(jnp.float32)

    if tq is None:
        tq = _choose_row_tile(N)
    assert N % tq == 0, "N must be divisible by the chosen row tile size"

    inv_temp = float(1.0 / temperature)
    use_const_shift = float(temperature) >= 0.02

    # One-shot fused prologue: normalize z2, transpose to (D, N), cast to bf16 so the
    # resident RHS is half the HBM/VMEM bytes and the MXU sees [M,K]x[K,N] directly.
    inv_n2 = jax.lax.rsqrt(jnp.maximum(jnp.sum(z2 * z2, axis=-1, keepdims=True), 1e-16))
    z2nt = (z2 * inv_n2).T.astype(jnp.bfloat16)                 # (D, N) bf16

    grid = (N // tq,)
    kernel = functools.partial(_contrastive_kernel, inv_temp=inv_temp,
                               use_const_shift=use_const_shift)

    # Real HBM traffic of the resident layout (each array streamed exactly once).
    bytes_accessed = N * D * 4 + D * N * 2 + N * D * 4 + N * 4
    vmem_est = (2 * D * N * 2             # resident z2^T (bf16, 2 bufs; only DMA'd once)
                + 2 * 2 * tq * D * 4      # double-buffered z1 + aligned-z2 row tiles (f32)
                + 2 * tq * N * 4          # (tq, N) scores + exp working set
                + 2 * tq * 4)             # output tile
    vmem_limit = int(min(48 * 1024 * 1024, max(16 * 1024 * 1024, 2 * vmem_est)))

    per_row = pl.pallas_call(
        kernel,
        out_shape=jax.ShapeDtypeStruct((N, 1), jnp.float32),
        grid_spec=pltpu.PrefetchScalarGridSpec(
            num_scalar_prefetch=0,
            grid=grid,
            in_specs=[
                pl.BlockSpec((tq, D), lambda i: (i, 0)),   # z1 row tile (f32)
                pl.BlockSpec((D, N), lambda i: (0, 0)),    # resident normalized z2^T (bf16)
                pl.BlockSpec((tq, D), lambda i: (i, 0)),   # z2 rows aligned with z1 (for pos)
            ],
            out_specs=pl.BlockSpec((tq, 1), lambda i: (i, 0)),
        ),
        compiler_params=pltpu.CompilerParams(
            dimension_semantics=("parallel",),
            vmem_limit_bytes=vmem_limit,
        ),
        cost_estimate=pl.CostEstimate(
            flops=2 * N * N * D + 8 * N * D,
            transcendentals=N * N + 3 * N,
            bytes_accessed=bytes_accessed,
        ),
    )(z1, z2nt, z2)

    # Tiny final reduction kept in JAX so the row grid axis stays "parallel".
    return -jnp.mean(per_row)


def _reference(z1, z2, temperature=0.1):
    z1 = z1.astype(jnp.float32)
    z2 = z2.astype(jnp.float32)
    n1 = jnp.linalg.norm(z1, axis=-1, keepdims=True)
    n2 = jnp.linalg.norm(z2, axis=-1, keepdims=True)
    sim = (z1 @ z2.T) / jnp.maximum(n1 * n2.T, 1e-8)
    pos = jnp.diag(sim)
    neg = jax.scipy.special.logsumexp(sim / temperature, axis=1)
    return -jnp.mean(pos - neg)


if __name__ == "__main__":
    key = jax.random.PRNGKey(0)
    k1, k2 = jax.random.split(key)
    N, D = 8, 32
    z1 = jax.random.normal(k1, (N, D), dtype=jnp.float32)
    z2 = jax.random.normal(k2, (N, D), dtype=jnp.float32)

    loss = contrastive_loss(z1, z2, temperature=0.1)
    jax.block_until_ready(loss)

    ref = _reference(z1, z2, temperature=0.1)
    # bf16 MXU operands -> relaxed tolerance (pos path stays f32-exact).
    assert jnp.allclose(loss, ref, rtol=3e-2, atol=3e-2), (loss, ref)

    print("KERNEL_OK")
</pallas_src>

<mosaic_0001>
module attributes {stable_mosaic.version = 11 : i64} {
  func.func @_contrastive_kernel(%arg0: i32, %arg1: memref<8x32xf32, #tpu.memory_space<vmem>>, %arg2: memref<32x8xbf16, #tpu.memory_space<vmem>>, %arg3: memref<8x32xf32, #tpu.memory_space<vmem>>, %arg4: memref<8x1xf32, #tpu.memory_space<vmem>>) attributes {dimension_semantics = [#tpu.dimension_semantics<parallel>], iteration_bounds = array<i64: 1>, scalar_prefetch = 0 : i64, scratch_operands = 0 : i64, tpu.core_type = #tpu.core_type<tc>, window_params = [{transform_indices = @transform_0, window_bounds = array<i64: 8, 32>}, {pipeline_mode = #tpu.pipeline_mode<synchronous>, transform_indices = @transform_1, window_bounds = array<i64: 32, 8>}, {transform_indices = @transform_2, window_bounds = array<i64: 8, 32>}, {transform_indices = @transform_3, window_bounds = array<i64: 8, 1>}]} {
    %c0 = arith.constant 0 : index
    %c0_0 = arith.constant 0 : index
    %0 = vector.load %arg1[%c0, %c0_0] : memref<8x32xf32, #tpu.memory_space<vmem>>, vector<8x32xf32>
    %1 = arith.mulf %0, %0 : vector<8x32xf32>
    %cst = arith.constant dense<0.000000e+00> : vector<8xf32>
    %2 = vector.multi_reduction <add>, %1, %cst [1] : vector<8x32xf32> to vector<8xf32>
    %3 = vector.shape_cast %2 : vector<8xf32> to vector<8x1xf32>
    %cst_1 = arith.constant 1.000000e-16 : f32
    %4 = vector.broadcast %cst_1 : f32 to vector<8x1xf32>
    %5 = arith.maximumf %3, %4 : vector<8x1xf32>
    %6 = math.rsqrt %5 : vector<8x1xf32>
    %7 = vector.broadcast %6 : vector<8x1xf32> to vector<8x32xf32>
    %8 = arith.mulf %0, %7 : vector<8x32xf32>
    %c0_2 = arith.constant 0 : index
    %c0_3 = arith.constant 0 : index
    %9 = vector.load %arg3[%c0_2, %c0_3] : memref<8x32xf32, #tpu.memory_space<vmem>>, vector<8x32xf32>
    %10 = arith.mulf %9, %9 : vector<8x32xf32>
    %cst_4 = arith.constant dense<0.000000e+00> : vector<8xf32>
    %11 = vector.multi_reduction <add>, %10, %cst_4 [1] : vector<8x32xf32> to vector<8xf32>
    %12 = vector.shape_cast %11 : vector<8xf32> to vector<8x1xf32>
    %cst_5 = arith.constant 1.000000e-16 : f32
    %13 = vector.broadcast %cst_5 : f32 to vector<8x1xf32>
    %14 = arith.maximumf %12, %13 : vector<8x1xf32>
    %15 = math.rsqrt %14 : vector<8x1xf32>
    %16 = vector.broadcast %15 : vector<8x1xf32> to vector<8x32xf32>
    %17 = arith.mulf %9, %16 : vector<8x32xf32>
    %18 = arith.mulf %8, %17 : vector<8x32xf32>
    %cst_6 = arith.constant dense<0.000000e+00> : vector<8xf32>
    %19 = vector.multi_reduction <add>, %18, %cst_6 [1] : vector<8x32xf32> to vector<8xf32>
    %20 = vector.shape_cast %19 : vector<8xf32> to vector<8x1xf32>
    %cst_7 = arith.constant 1.000000e+01 : f32
    %21 = vector.broadcast %cst_7 : f32 to vector<8x32xf32>
    %22 = arith.mulf %8, %21 : vector<8x32xf32>
    %23 = arith.truncf %22 : vector<8x32xf32> to vector<8x32xbf16>
    %c0_8 = arith.constant 0 : index
    %c0_9 = arith.constant 0 : index
    %24 = vector.load %arg2[%c0_8, %c0_9] : memref<32x8xbf16, #tpu.memory_space<vmem>>, vector<32x8xbf16>
    %cst_10 = arith.constant dense<0.000000e+00> : vector<8x8xf32>
    %25 = tpu.matmul %23, %24, %cst_10 {dimension_numbers = #tpu.dot_dimension_numbers<[1], [0], [0], [1], [0, 0, 1, 1], [], []>} : vector<8x32xbf16>, vector<32x8xbf16>, vector<8x8xf32> -> vector<8x8xf32>
    %cst_11 = arith.constant 1.000000e+01 : f32
    %26 = vector.broadcast %cst_11 : f32 to vector<8x8xf32>
    %27 = arith.subf %25, %26 : vector<8x8xf32>
    %28 = math.exp %27 : vector<8x8xf32>
    %cst_12 = arith.constant dense<0.000000e+00> : vector<8xf32>
    %29 = vector.multi_reduction <add>, %28, %cst_12 [1] : vector<8x8xf32> to vector<8xf32>
    %30 = vector.shape_cast %29 : vector<8xf32> to vector<8x1xf32>
    %31 = math.log %30 : vector<8x1xf32>
    %cst_13 = arith.constant 1.000000e+01 : f32
    %32 = vector.broadcast %cst_13 : f32 to vector<8x1xf32>
    %33 = arith.addf %32, %31 : vector<8x1xf32>
    %34 = arith.subf %20, %33 : vector<8x1xf32>
    %c0_14 = arith.constant 0 : index
    %c0_15 = arith.constant 0 : index
    %35 = vector.load %arg4[%c0_14, %c0_15] : memref<8x1xf32, #tpu.memory_space<vmem>>, vector<8x1xf32>
    tpu.vector_store %arg4[%c0_14, %c0_15], %34 {strides = array<i32>} : memref<8x1xf32, #tpu.memory_space<vmem>>, vector<8x1xf32>,
    return
  }
  func.func @transform_0(%arg0: i32) -> (i32, i32) {
    %c0_i32 = arith.constant 0 : i32
    %c0_i32_0 = arith.constant 0 : i32
    return %arg0, %c0_i32 : i32, i32
  }
  func.func @transform_1(%arg0: i32) -> (i32, i32) {
    %c0_i32 = arith.constant 0 : i32
    %c0_i32_0 = arith.constant 0 : i32
    %c0_i32_1 = arith.constant 0 : i32
    return %c0_i32, %c0_i32_0 : i32, i32
  }
  func.func @transform_2(%arg0: i32) -> (i32, i32) {
    %c0_i32 = arith.constant 0 : i32
    %c0_i32_0 = arith.constant 0 : i32
    return %arg0, %c0_i32 : i32, i32
  }
  func.func @transform_3(%arg0: i32) -> (i32, i32) {
    %c0_i32 = arith.constant 0 : i32
    %c0_i32_0 = arith.constant 0 : i32
    return %arg0, %c0_i32 : i32, i32
  }
}

</mosaic_0001>

<llo_original>
// kernel: tpu_custom_call.1
$region0: #{tpu_custom_call.1}
  #allocation0 [shape = 'u32[]', space=smem, size = 0x4, offset = 0x4, fixed_abs, tag = 'smem constant byte address 0x4 - core index']
  #allocation1 [shape = 'u32[144,128]{1,0:T(1,128)}', space=vmem, size = 0x12000, scoped, tag = 'internal scratch']
  %s0 = inlined_call_operand.vmem [shape: f32[8,32], index: 0, kind: input, shape index: {}]
  %s1 = inlined_call_operand.vmem [shape: bf16[32,8], index: 1, kind: input, shape index: {}]
  %s2 = inlined_call_operand.vmem [shape: f32[8,32], index: 2, kind: input, shape index: {}]
  %s3 = inlined_call_operand.vmem [shape: f32[8,1], index: 3, kind: output, shape index: {}]
  %s4 = sld [smem:[#allocation0]]
  $region22: #{tpu_custom_call.1} parent=0
    _
  %s6 = ssub.s32 1, %s4
  %s7 = scalar_select 0, %s6, %s4
  // Predicated region
  $region2: #{tpu_custom_call.1} parent=0 // pred_check
    _
  $region3: #{tpu_custom_call.1} parent=0 // pred_check_branch
    %9 = sbr.rel (0) target = $region5
  $region4: #{tpu_custom_call.1} parent=0 // pred_region
    _
  $region5: #{tpu_custom_call.1} parent=0 // pred_fallthru
    _
  // Predicated region
  $region6: #{tpu_custom_call.1} parent=0 // pred_check
    _
  $region7: #{tpu_custom_call.1} parent=0 // pred_check_branch
    %11 = sbr.rel (0) target = $region9
  $region8: #{tpu_custom_call.1} parent=0 // pred_region
    _
  $region9: #{tpu_custom_call.1} parent=0 // pred_fallthru
    _
  // Predicated region
  $region10: #{tpu_custom_call.1} parent=0 // pred_check
    _
  $region11: #{tpu_custom_call.1} parent=0 // pred_check_branch
    %13 = sbr.rel (0) target = $region13
  $region12: #{tpu_custom_call.1} parent=0 // pred_region
    _
  $region13: #{tpu_custom_call.1} parent=0 // pred_fallthru
    _
  %v15 = vld [vmem:[%s0] sm:$0xff]
  %v16 = vmul.f32 %v15, %v15
  %vm17 = vcmask 261120
  %v18 = vsel %vm17, %v16, 0.0
  %19 = vadd.xlane.f32.xlu0 %v18
  %v20 = vpop.xlane.xlu0 %19
  %v21 = vmax.f32 %v20, 1e-16
  %v22 = vrsqrt.pop %v21
  %v23 = vmul.f32 %v15, %v22
  %v24 = vld [vmem:[%s2] sm:$0xff]
  %v25 = vmul.f32 %v24, %v24
  %v26 = vsel %vm17, %v25, 0.0
  %27 = vadd.xlane.f32.xlu0 %v26
  %v28 = vpop.xlane.xlu0 %27
  %v29 = vmax.f32 %v28, 1e-16
  %v30 = vrsqrt.pop %v29
  %v31 = vmul.f32 %v24, %v30
  %v32 = vmul.f32 %v23, %v31
  %v33 = vsel %vm17, %v32, 0.0
  %34 = vadd.xlane.f32.xlu0 %v33
  %v35 = vpop.xlane.xlu0 %34
  %v36 = vmul.f32 %v23, 10.0
  %v37 = vpack.c.bf16 %v36, %v36
  %v38 = vld [vmem:[%s1] sm:$0xf]
  %v39 = vld [vmem:[%s1 + $0x4] sm:$0xf]
  %v40 = vld [vmem:[%s1 + $0x8] sm:$0xf]
  %v41 = vld [vmem:[%s1 + $0xc] sm:$0xf]
  %v46 = vunpack.c.l.b16 %v38
  %v47 = vunpack.c.l.b16 %v39
  %v48 = vunpack.c.l.b16 %v40
  %v49 = vunpack.c.l.b16 %v41
  %v50 = vpack.c.b16 %v47, %v46
  %v51 = vpack.c.b16 %v49, %v48
  %v55 = vsel %vm17, %v37, 0
  %57 = vmatprep.subr.bf16.mxu0 0
  %58 = vmatpush1.bf16.msra.mxu0 0
  %59 = vmatprep.subr.bf16.mxu0 0
  %60 = vmatpush1.bf16.msra.mxu0 0
  %61 = vmatprep.subr.bf16.mxu0 0
  %62 = vmatpush1.bf16.msra.mxu0 0
  %63 = vmatprep.subr.bf16.mxu0 0
  %64 = vmatpush1.bf16.msra.mxu0 0
  %65 = vmatprep.subr.bf16.mxu0 0
  %66 = vmatpush1.bf16.msra.mxu0 0
  %67 = vmatprep.subr.bf16.mxu0 0
  %68 = vmatpush1.bf16.msra.mxu0 0
  %69 = vmatprep.subr.bf16.mxu0 0
  %70 = vmatpush1.bf16.msra.mxu0 %v51
  %71 = vmatprep.subr.bf16.mxu0 0
  %72 = vmatpush1.bf16.msra.mxu0 %v50
  %73 = vmatprep.subr.bf16.mxu0 0
  %74 = vmatpush2.bf16.msra.mxu0 0
  %75 = vmatprep.subr.bf16.mxu0 0
  %76 = vmatpush2.bf16.msra.mxu0 0
  %77 = vmatprep.subr.bf16.mxu0 0
  %78 = vmatpush2.bf16.msra.mxu0 0
  %79 = vmatprep.subr.bf16.mxu0 0
  %80 = vmatpush2.bf16.msra.mxu0 0
  %81 = vmatprep.subr.bf16.mxu0 0
  %82 = vmatpush2.bf16.msra.mxu0 0
  %83 = vmatprep.subr.bf16.mxu0 0
  %84 = vmatpush2.bf16.msra.mxu0 0
  %85 = vmatprep.subr.bf16.mxu0 0
  %86 = vmatpush2.bf16.msra.mxu0 0
  %87 = vmatprep.subr.bf16.mxu0 0
  %88 = vmatpush2.bf16.msra.mxu0 0
  %89 = vmatprep.mubr.bf16.mxu0 0
  %90 = vmatmul.mubr.bf16.gmra.mxu0 %v55
  %v91 = vpop.f32.mrf.mxu0
  %v92 = vadd.f32 0.0, %v91
  %v93 = vpop.f32.mrf.mxu0
  %v94 = vpop.f32.mrf.mxu0
  %v95 = vpop.f32.mrf.mxu0
  %96 = vdwg.mxu0
  %v97 = vsub.f32 %v92, 10.0
  %v98 = vmul.f32 %v97, 1.442695
  %v99 = vpow.pop %v98
  %vm100 = vcmask 64512
  %v101 = vsel %vm100, %v99, 0.0
  %102 = vadd.xlane.f32.xlu0 %v101
  %v103 = vpop.xlane.xlu0 %102
  %v104 = vlog2.pop %v103
  %v105 = vmul.f32 %v104, 0.6931472
  %v106 = vadd.f32 %v105, 10.0
  %v107 = vsub.f32 %v35, %v106
  %vm108 = vcmask 7168
  %109 = vst.msk [vmem:[%s3] sm:$0xff] %vm108, %v107
  // Predicated region
  $region14: #{tpu_custom_call.1} parent=0 // pred_check
    _
  $region15: #{tpu_custom_call.1} parent=0 // pred_check_branch
    %111 = sbr.rel (0) target = $region17
  $region16: #{tpu_custom_call.1} parent=0 // pred_region
    _
  $region17: #{tpu_custom_call.1} parent=0 // pred_fallthru
    _
  // Predicated region
  $region18: #{tpu_custom_call.1} parent=0 // pred_check
    _
  $region19: #{tpu_custom_call.1} parent=0 // pred_check_branch
    %113 = sbr.rel (0) target = $region21
  $region20: #{tpu_custom_call.1} parent=0 // pred_region
    _
  $region21: #{tpu_custom_call.1} parent=0 // pred_fallthru
    _

</llo_original>
